<compile_context>
chip_gen: v7x
topology: tpu7x:2x2x1
jax: 0.10.0
libtpu: 0.0.40
codegen_flags: <defaults>
</compile_context>

<pallas_src>
import math
import functools

import jax
import jax.numpy as jnp
import numpy as np
from jax.experimental import pallas as pl
from jax.experimental.pallas import tpu as pltpu


# -----------------------------------------------------------------------------
# Pallas kernel: fused k-layer GCN block
#   (Ahat @ (H @ W) + b) -> BatchNorm(train) -> ReLU   repeated k times
# Activations are kept in "batch packed on lanes" layout: (N, B*C).
# -----------------------------------------------------------------------------
def _fused_gcn_block_kernel(num_layers, batch, *refs):
    """refs = (adj, h0, [W_blk, bias_t, gamma, beta] * num_layers, out)."""
    adj_ref, h_ref = refs[0], refs[1]
    o_ref = refs[-1]
    layer_refs = refs[2:-1]

    adj = adj_ref[...]                       # (N, N)  normalized adjacency
    h = h_ref[...]                           # (N, B*C0)  batch packed on lanes
    n_nodes = adj.shape[0]
    inv_count = 1.0 / float(batch * n_nodes)

    # Static unroll over layers (per-layer channel sizes differ).
    for l in range(num_layers):
        w_blk = layer_refs[4 * l + 0][...]   # (B*Cin, B*Cout) block-diagonal W
        bias_t = layer_refs[4 * l + 1][...]  # (1, B*Cout)  bias tiled over batch
        gamma = layer_refs[4 * l + 2][...]   # (1, Cout)
        beta = layer_refs[4 * l + 3][...]    # (1, Cout)
        cout = gamma.shape[-1]

        # GCNConv: Z = Ahat @ (H @ W) + bias -- all batches in two lane-dense
        # 2D dots (block-diagonal weight keeps the packed layout).
        xw = jnp.dot(h, w_blk, preferred_element_type=jnp.float32)      # (N, B*Cout)
        z = jnp.dot(adj, xw, preferred_element_type=jnp.float32) + bias_t

        # BatchNorm1d (training mode): per-channel stats over batch*nodes,
        # single pass via sum / sum-of-squares, then fold the batch lane-groups.
        s = jnp.sum(z, axis=0, keepdims=True)        # (1, B*Cout)
        ss = jnp.sum(z * z, axis=0, keepdims=True)   # (1, B*Cout)
        s_c, ss_c = s[:, :cout], ss[:, :cout]
        for b in range(1, batch):
            s_c = s_c + s[:, b * cout:(b + 1) * cout]
            ss_c = ss_c + ss[:, b * cout:(b + 1) * cout]
        mean = s_c * inv_count                       # (1, Cout)
        var = ss_c * inv_count - mean * mean         # biased variance
        inv_std = jax.lax.rsqrt(var + 1e-5)
        scale = gamma * inv_std                      # (1, Cout)
        shift = beta - mean * scale                  # (1, Cout)
        scale_t = jnp.concatenate([scale] * batch, axis=1)   # (1, B*Cout)
        shift_t = jnp.concatenate([shift] * batch, axis=1)   # (1, B*Cout)

        # BN affine + ReLU; result feeds the next layer (stays in vregs).
        h = jnp.maximum(z * scale_t + shift_t, 0.0)

    o_ref[...] = h.astype(o_ref.dtype)


# -----------------------------------------------------------------------------
# Glue: GCN normalization of the weighted graph (plain JAX, hoisted / done once)
# -----------------------------------------------------------------------------
def build_normalized_adjacency(edge_index, edge_weight, num_nodes):
    row, col = edge_index[0], edge_index[1]          # edges row -> col
    A = jnp.zeros((num_nodes, num_nodes), jnp.float32)
    # A[i, j] = weight of edge j -> i  (aggregate at target node)
    A = A.at[col, row].add(edge_weight.astype(jnp.float32))
    A = A + jnp.eye(num_nodes, dtype=jnp.float32)    # self loops, weight 1
    deg = A.sum(axis=1)                              # weighted in-degree
    dinv = jnp.where(deg > 0, 1.0 / jnp.sqrt(deg), 0.0)
    return dinv[:, None] * A * dinv[None, :]


# -----------------------------------------------------------------------------
# WeightedGCNBlock: parameter init + forward
# -----------------------------------------------------------------------------
def init_weighted_gcn_block(key, in_features, hidden_sizes, out_features):
    params = []
    cin = in_features
    for cout in list(hidden_sizes) + [out_features]:
        key, k_w, k_b, k_g = jax.random.split(key, 4)
        limit = math.sqrt(6.0 / (cin + cout))        # glorot (GCNConv default)
        W = jax.random.uniform(k_w, (cin, cout), jnp.float32, -limit, limit)
        bias = 0.01 * jax.random.normal(k_b, (1, cout), jnp.float32)
        gamma = 1.0 + 0.1 * jax.random.normal(k_g, (1, cout), jnp.float32)
        beta = jnp.zeros((1, cout), jnp.float32)
        params.append((W, bias, gamma, beta))
        cin = cout
    return params


@jax.jit
def weighted_gcn_block_forward_from_adj(params, node_features, adj):
    """Fused forward; adj is precomputed once (graph is static across calls)."""
    B, N, C0 = node_features.shape
    num_layers = len(params)
    c_last = params[-1][0].shape[1]

    # Pack batch onto lanes: (B, N, C0) -> (N, B*C0).
    h0 = jnp.transpose(node_features, (1, 0, 2)).reshape(N, B * C0)

    # Per-layer packed params: block-diagonal weight + batch-tiled bias.
    packed = []
    for (W, b, gamma, beta) in params:
        cin, cout = W.shape
        w_blk = jnp.kron(jnp.eye(B, dtype=jnp.float32), W)     # (B*cin, B*cout)
        bias_t = jnp.tile(b.reshape(1, cout), (1, B))          # (1, B*cout)
        packed += [w_blk, bias_t, gamma.reshape(1, cout), beta.reshape(1, cout)]

    kernel = functools.partial(_fused_gcn_block_kernel, num_layers, B)
    out_packed = pl.pallas_call(
        kernel,
        out_shape=jax.ShapeDtypeStruct((N, B * c_last), jnp.float32),
        in_specs=[pl.BlockSpec(memory_space=pltpu.MemorySpace.VMEM)]
        * (2 + 4 * num_layers),
        out_specs=pl.BlockSpec(memory_space=pltpu.MemorySpace.VMEM),
    )(adj, h0, *packed)

    # Unpack lanes back to (B, N, C_last).
    return jnp.transpose(out_packed.reshape(N, B, c_last), (1, 0, 2))


def weighted_gcn_block_forward(params, node_features, edge_index, edges_weight):
    """Convenience wrapper matching the module signature."""
    N = node_features.shape[1]
    adj = build_normalized_adjacency(edge_index, edges_weight, N)
    return weighted_gcn_block_forward_from_adj(params, node_features, adj)


# Pure-JAX reference (same math, two-pass BN) for a correctness check.
def _reference_forward(params, node_features, adj):
    h = node_features
    for (W, b, gamma, beta) in params:
        z = jnp.einsum("ij,bjc->bic", adj, h @ W) + b
        mean = z.mean(axis=(0, 1), keepdims=True)
        var = ((z - mean) ** 2).mean(axis=(0, 1), keepdims=True)
        z = (z - mean) * jax.lax.rsqrt(var + 1e-5) * gamma + beta
        h = jnp.maximum(z, 0.0)
    return h


if __name__ == "__main__":
    key = jax.random.PRNGKey(0)

    B, N = 2, 16                     # batch of graphs sharing edge_index
    in_features = 8
    hidden_sizes = [16, 32]
    out_features = 16

    k_feat, k_w, k_param = jax.random.split(key, 3)

    # Deterministic node features (B, N, Cin).
    node_features = jax.random.normal(k_feat, (B, N, in_features), jnp.float32)

    # Deterministic weighted ring graph (both directions), no self loops.
    src = jnp.arange(N, dtype=jnp.int32)
    dst = (src + 1) % N
    edge_index = jnp.concatenate(
        [jnp.stack([src, dst]), jnp.stack([dst, src])], axis=1)   # (2, 2N)
    edges_weight = jax.random.uniform(
        k_w, (edge_index.shape[1],), jnp.float32, 0.5, 1.5)

    params = init_weighted_gcn_block(k_param, in_features, hidden_sizes,
                                     out_features)

    # Hoisted adjacency build: the scatter-add + normalization runs once,
    # outside the jitted forward.
    adj = jax.block_until_ready(
        build_normalized_adjacency(edge_index, edges_weight, N))

    out = weighted_gcn_block_forward_from_adj(params, node_features, adj)
    out = jax.block_until_ready(out)

    ref = _reference_forward(params, node_features, adj)
    np.testing.assert_allclose(np.asarray(out), np.asarray(ref),
                               rtol=2e-4, atol=2e-4)
    assert out.shape == (B, N, out_features)

    print("KERNEL_OK")
</pallas_src>

<mosaic_0001>
module attributes {stable_mosaic.version = 11 : i64} {
  func.func @_fused_gcn_block_kernel(%arg0: memref<16x16xf32, #tpu.memory_space<vmem>>, %arg1: memref<16x16xf32, #tpu.memory_space<vmem>>, %arg2: memref<16x32xf32, #tpu.memory_space<vmem>>, %arg3: memref<1x32xf32, #tpu.memory_space<vmem>>, %arg4: memref<1x16xf32, #tpu.memory_space<vmem>>, %arg5: memref<1x16xf32, #tpu.memory_space<vmem>>, %arg6: memref<32x64xf32, #tpu.memory_space<vmem>>, %arg7: memref<1x64xf32, #tpu.memory_space<vmem>>, %arg8: memref<1x32xf32, #tpu.memory_space<vmem>>, %arg9: memref<1x32xf32, #tpu.memory_space<vmem>>, %arg10: memref<64x32xf32, #tpu.memory_space<vmem>>, %arg11: memref<1x32xf32, #tpu.memory_space<vmem>>, %arg12: memref<1x16xf32, #tpu.memory_space<vmem>>, %arg13: memref<1x16xf32, #tpu.memory_space<vmem>>, %arg14: memref<16x32xf32, #tpu.memory_space<vmem>>) attributes {dimension_semantics = [], scalar_prefetch = 0 : i64, scratch_operands = 0 : i64, tpu.core_type = #tpu.core_type<tc>} {
    %c0 = arith.constant 0 : index
    %c0_0 = arith.constant 0 : index
    %0 = vector.load %arg0[%c0, %c0_0] : memref<16x16xf32, #tpu.memory_space<vmem>>, vector<16x16xf32>
    %c0_1 = arith.constant 0 : index
    %c0_2 = arith.constant 0 : index
    %1 = vector.load %arg1[%c0_1, %c0_2] : memref<16x16xf32, #tpu.memory_space<vmem>>, vector<16x16xf32>
    %c0_3 = arith.constant 0 : index
    %c0_4 = arith.constant 0 : index
    %2 = vector.load %arg2[%c0_3, %c0_4] : memref<16x32xf32, #tpu.memory_space<vmem>>, vector<16x32xf32>
    %c0_5 = arith.constant 0 : index
    %c0_6 = arith.constant 0 : index
    %3 = vector.load %arg3[%c0_5, %c0_6] : memref<1x32xf32, #tpu.memory_space<vmem>>, vector<1x32xf32>
    %c0_7 = arith.constant 0 : index
    %c0_8 = arith.constant 0 : index
    %4 = vector.load %arg4[%c0_7, %c0_8] : memref<1x16xf32, #tpu.memory_space<vmem>>, vector<1x16xf32>
    %c0_9 = arith.constant 0 : index
    %c0_10 = arith.constant 0 : index
    %5 = vector.load %arg5[%c0_9, %c0_10] : memref<1x16xf32, #tpu.memory_space<vmem>>, vector<1x16xf32>
    %cst = arith.constant dense<0.000000e+00> : vector<16x32xf32>
    %6 = tpu.matmul %1, %2, %cst {dimension_numbers = #tpu.dot_dimension_numbers<[1], [0], [0], [1], [0, 0, 1, 1], [], []>} : vector<16x16xf32>, vector<16x32xf32>, vector<16x32xf32> -> vector<16x32xf32>
    %cst_11 = arith.constant dense<0.000000e+00> : vector<16x32xf32>
    %7 = tpu.matmul %0, %6, %cst_11 {dimension_numbers = #tpu.dot_dimension_numbers<[1], [0], [0], [1], [0, 0, 1, 1], [], []>} : vector<16x16xf32>, vector<16x32xf32>, vector<16x32xf32> -> vector<16x32xf32>
    %8 = vector.broadcast %3 : vector<1x32xf32> to vector<16x32xf32>
    %9 = arith.addf %7, %8 : vector<16x32xf32>
    %cst_12 = arith.constant dense<0.000000e+00> : vector<32xf32>
    %10 = vector.multi_reduction <add>, %9, %cst_12 [0] : vector<16x32xf32> to vector<32xf32>
    %11 = vector.shape_cast %10 : vector<32xf32> to vector<1x32xf32>
    %12 = arith.mulf %9, %9 : vector<16x32xf32>
    %cst_13 = arith.constant dense<0.000000e+00> : vector<32xf32>
    %13 = vector.multi_reduction <add>, %12, %cst_13 [0] : vector<16x32xf32> to vector<32xf32>
    %14 = vector.shape_cast %13 : vector<32xf32> to vector<1x32xf32>
    %15 = vector.extract_strided_slice %11 {offsets = [0, 0], sizes = [1, 16], strides = [1, 1]} : vector<1x32xf32> to vector<1x16xf32>
    %16 = vector.extract_strided_slice %14 {offsets = [0, 0], sizes = [1, 16], strides = [1, 1]} : vector<1x32xf32> to vector<1x16xf32>
    %17 = vector.extract_strided_slice %11 {offsets = [0, 16], sizes = [1, 16], strides = [1, 1]} : vector<1x32xf32> to vector<1x16xf32>
    %18 = arith.addf %15, %17 : vector<1x16xf32>
    %19 = vector.extract_strided_slice %14 {offsets = [0, 16], sizes = [1, 16], strides = [1, 1]} : vector<1x32xf32> to vector<1x16xf32>
    %20 = arith.addf %16, %19 : vector<1x16xf32>
    %cst_14 = arith.constant 3.125000e-02 : f32
    %21 = vector.broadcast %cst_14 : f32 to vector<1x16xf32>
    %22 = arith.mulf %18, %21 : vector<1x16xf32>
    %cst_15 = arith.constant 3.125000e-02 : f32
    %23 = vector.broadcast %cst_15 : f32 to vector<1x16xf32>
    %24 = arith.mulf %20, %23 : vector<1x16xf32>
    %25 = arith.mulf %22, %22 : vector<1x16xf32>
    %26 = arith.subf %24, %25 : vector<1x16xf32>
    %cst_16 = arith.constant 9.99999974E-6 : f32
    %27 = vector.broadcast %cst_16 : f32 to vector<1x16xf32>
    %28 = arith.addf %26, %27 : vector<1x16xf32>
    %29 = math.rsqrt %28 : vector<1x16xf32>
    %30 = arith.mulf %4, %29 : vector<1x16xf32>
    %31 = arith.mulf %22, %30 : vector<1x16xf32>
    %32 = arith.subf %5, %31 : vector<1x16xf32>
    %33 = tpu.concatenate %30, %30 in 1 : vector<1x16xf32>, vector<1x16xf32> -> vector<1x32xf32>
    %34 = tpu.concatenate %32, %32 in 1 : vector<1x16xf32>, vector<1x16xf32> -> vector<1x32xf32>
    %35 = vector.broadcast %33 : vector<1x32xf32> to vector<16x32xf32>
    %36 = arith.mulf %9, %35 : vector<16x32xf32>
    %37 = vector.broadcast %34 : vector<1x32xf32> to vector<16x32xf32>
    %38 = arith.addf %36, %37 : vector<16x32xf32>
    %cst_17 = arith.constant 0.000000e+00 : f32
    %39 = vector.broadcast %cst_17 : f32 to vector<16x32xf32>
    %40 = arith.maximumf %38, %39 : vector<16x32xf32>
    %c0_18 = arith.constant 0 : index
    %c0_19 = arith.constant 0 : index
    %41 = vector.load %arg6[%c0_18, %c0_19] : memref<32x64xf32, #tpu.memory_space<vmem>>, vector<32x64xf32>
    %c0_20 = arith.constant 0 : index
    %c0_21 = arith.constant 0 : index
    %42 = vector.load %arg7[%c0_20, %c0_21] : memref<1x64xf32, #tpu.memory_space<vmem>>, vector<1x64xf32>
    %c0_22 = arith.constant 0 : index
    %c0_23 = arith.constant 0 : index
    %43 = vector.load %arg8[%c0_22, %c0_23] : memref<1x32xf32, #tpu.memory_space<vmem>>, vector<1x32xf32>
    %c0_24 = arith.constant 0 : index
    %c0_25 = arith.constant 0 : index
    %44 = vector.load %arg9[%c0_24, %c0_25] : memref<1x32xf32, #tpu.memory_space<vmem>>, vector<1x32xf32>
    %cst_26 = arith.constant dense<0.000000e+00> : vector<16x64xf32>
    %45 = tpu.matmul %40, %41, %cst_26 {dimension_numbers = #tpu.dot_dimension_numbers<[1], [0], [0], [1], [0, 0, 1, 1], [], []>} : vector<16x32xf32>, vector<32x64xf32>, vector<16x64xf32> -> vector<16x64xf32>
    %cst_27 = arith.constant dense<0.000000e+00> : vector<16x64xf32>
    %46 = tpu.matmul %0, %45, %cst_27 {dimension_numbers = #tpu.dot_dimension_numbers<[1], [0], [0], [1], [0, 0, 1, 1], [], []>} : vector<16x16xf32>, vector<16x64xf32>, vector<16x64xf32> -> vector<16x64xf32>
    %47 = vector.broadcast %42 : vector<1x64xf32> to vector<16x64xf32>
    %48 = arith.addf %46, %47 : vector<16x64xf32>
    %cst_28 = arith.constant dense<0.000000e+00> : vector<64xf32>
    %49 = vector.multi_reduction <add>, %48, %cst_28 [0] : vector<16x64xf32> to vector<64xf32>
    %50 = vector.shape_cast %49 : vector<64xf32> to vector<1x64xf32>
    %51 = arith.mulf %48, %48 : vector<16x64xf32>
    %cst_29 = arith.constant dense<0.000000e+00> : vector<64xf32>
    %52 = vector.multi_reduction <add>, %51, %cst_29 [0] : vector<16x64xf32> to vector<64xf32>
    %53 = vector.shape_cast %52 : vector<64xf32> to vector<1x64xf32>
    %54 = vector.extract_strided_slice %50 {offsets = [0, 0], sizes = [1, 32], strides = [1, 1]} : vector<1x64xf32> to vector<1x32xf32>
    %55 = vector.extract_strided_slice %53 {offsets = [0, 0], sizes = [1, 32], strides = [1, 1]} : vector<1x64xf32> to vector<1x32xf32>
    %56 = vector.extract_strided_slice %50 {offsets = [0, 32], sizes = [1, 32], strides = [1, 1]} : vector<1x64xf32> to vector<1x32xf32>
    %57 = arith.addf %54, %56 : vector<1x32xf32>
    %58 = vector.extract_strided_slice %53 {offsets = [0, 32], sizes = [1, 32], strides = [1, 1]} : vector<1x64xf32> to vector<1x32xf32>
    %59 = arith.addf %55, %58 : vector<1x32xf32>
    %cst_30 = arith.constant 3.125000e-02 : f32
    %60 = vector.broadcast %cst_30 : f32 to vector<1x32xf32>
    %61 = arith.mulf %57, %60 : vector<1x32xf32>
    %cst_31 = arith.constant 3.125000e-02 : f32
    %62 = vector.broadcast %cst_31 : f32 to vector<1x32xf32>
    %63 = arith.mulf %59, %62 : vector<1x32xf32>
    %64 = arith.mulf %61, %61 : vector<1x32xf32>
    %65 = arith.subf %63, %64 : vector<1x32xf32>
    %cst_32 = arith.constant 9.99999974E-6 : f32
    %66 = vector.broadcast %cst_32 : f32 to vector<1x32xf32>
    %67 = arith.addf %65, %66 : vector<1x32xf32>
    %68 = math.rsqrt %67 : vector<1x32xf32>
    %69 = arith.mulf %43, %68 : vector<1x32xf32>
    %70 = arith.mulf %61, %69 : vector<1x32xf32>
    %71 = arith.subf %44, %70 : vector<1x32xf32>
    %72 = tpu.concatenate %69, %69 in 1 : vector<1x32xf32>, vector<1x32xf32> -> vector<1x64xf32>
    %73 = tpu.concatenate %71, %71 in 1 : vector<1x32xf32>, vector<1x32xf32> -> vector<1x64xf32>
    %74 = vector.broadcast %72 : vector<1x64xf32> to vector<16x64xf32>
    %75 = arith.mulf %48, %74 : vector<16x64xf32>
    %76 = vector.broadcast %73 : vector<1x64xf32> to vector<16x64xf32>
    %77 = arith.addf %75, %76 : vector<16x64xf32>
    %cst_33 = arith.constant 0.000000e+00 : f32
    %78 = vector.broadcast %cst_33 : f32 to vector<16x64xf32>
    %79 = arith.maximumf %77, %78 : vector<16x64xf32>
    %c0_34 = arith.constant 0 : index
    %c0_35 = arith.constant 0 : index
    %80 = vector.load %arg10[%c0_34, %c0_35] : memref<64x32xf32, #tpu.memory_space<vmem>>, vector<64x32xf32>
    %c0_36 = arith.constant 0 : index
    %c0_37 = arith.constant 0 : index
    %81 = vector.load %arg11[%c0_36, %c0_37] : memref<1x32xf32, #tpu.memory_space<vmem>>, vector<1x32xf32>
    %c0_38 = arith.constant 0 : index
    %c0_39 = arith.constant 0 : index
    %82 = vector.load %arg12[%c0_38, %c0_39] : memref<1x16xf32, #tpu.memory_space<vmem>>, vector<1x16xf32>
    %c0_40 = arith.constant 0 : index
    %c0_41 = arith.constant 0 : index
    %83 = vector.load %arg13[%c0_40, %c0_41] : memref<1x16xf32, #tpu.memory_space<vmem>>, vector<1x16xf32>
    %cst_42 = arith.constant dense<0.000000e+00> : vector<16x32xf32>
    %84 = tpu.matmul %79, %80, %cst_42 {dimension_numbers = #tpu.dot_dimension_numbers<[1], [0], [0], [1], [0, 0, 1, 1], [], []>} : vector<16x64xf32>, vector<64x32xf32>, vector<16x32xf32> -> vector<16x32xf32>
    %cst_43 = arith.constant dense<0.000000e+00> : vector<16x32xf32>
    %85 = tpu.matmul %0, %84, %cst_43 {dimension_numbers = #tpu.dot_dimension_numbers<[1], [0], [0], [1], [0, 0, 1, 1], [], []>} : vector<16x16xf32>, vector<16x32xf32>, vector<16x32xf32> -> vector<16x32xf32>
    %86 = vector.broadcast %81 : vector<1x32xf32> to vector<16x32xf32>
    %87 = arith.addf %85, %86 : vector<16x32xf32>
    %cst_44 = arith.constant dense<0.000000e+00> : vector<32xf32>
    %88 = vector.multi_reduction <add>, %87, %cst_44 [0] : vector<16x32xf32> to vector<32xf32>
    %89 = vector.shape_cast %88 : vector<32xf32> to vector<1x32xf32>
    %90 = arith.mulf %87, %87 : vector<16x32xf32>
    %cst_45 = arith.constant dense<0.000000e+00> : vector<32xf32>
    %91 = vector.multi_reduction <add>, %90, %cst_45 [0] : vector<16x32xf32> to vector<32xf32>
    %92 = vector.shape_cast %91 : vector<32xf32> to vector<1x32xf32>
    %93 = vector.extract_strided_slice %89 {offsets = [0, 0], sizes = [1, 16], strides = [1, 1]} : vector<1x32xf32> to vector<1x16xf32>
    %94 = vector.extract_strided_slice %92 {offsets = [0, 0], sizes = [1, 16], strides = [1, 1]} : vector<1x32xf32> to vector<1x16xf32>
    %95 = vector.extract_strided_slice %89 {offsets = [0, 16], sizes = [1, 16], strides = [1, 1]} : vector<1x32xf32> to vector<1x16xf32>
    %96 = arith.addf %93, %95 : vector<1x16xf32>
    %97 = vector.extract_strided_slice %92 {offsets = [0, 16], sizes = [1, 16], strides = [1, 1]} : vector<1x32xf32> to vector<1x16xf32>
    %98 = arith.addf %94, %97 : vector<1x16xf32>
    %cst_46 = arith.constant 3.125000e-02 : f32
    %99 = vector.broadcast %cst_46 : f32 to vector<1x16xf32>
    %100 = arith.mulf %96, %99 : vector<1x16xf32>
    %cst_47 = arith.constant 3.125000e-02 : f32
    %101 = vector.broadcast %cst_47 : f32 to vector<1x16xf32>
    %102 = arith.mulf %98, %101 : vector<1x16xf32>
    %103 = arith.mulf %100, %100 : vector<1x16xf32>
    %104 = arith.subf %102, %103 : vector<1x16xf32>
    %cst_48 = arith.constant 9.99999974E-6 : f32
    %105 = vector.broadcast %cst_48 : f32 to vector<1x16xf32>
    %106 = arith.addf %104, %105 : vector<1x16xf32>
    %107 = math.rsqrt %106 : vector<1x16xf32>
    %108 = arith.mulf %82, %107 : vector<1x16xf32>
    %109 = arith.mulf %100, %108 : vector<1x16xf32>
    %110 = arith.subf %83, %109 : vector<1x16xf32>
    %111 = tpu.concatenate %108, %108 in 1 : vector<1x16xf32>, vector<1x16xf32> -> vector<1x32xf32>
    %112 = tpu.concatenate %110, %110 in 1 : vector<1x16xf32>, vector<1x16xf32> -> vector<1x32xf32>
    %113 = vector.broadcast %111 : vector<1x32xf32> to vector<16x32xf32>
    %114 = arith.mulf %87, %113 : vector<16x32xf32>
    %115 = vector.broadcast %112 : vector<1x32xf32> to vector<16x32xf32>
    %116 = arith.addf %114, %115 : vector<16x32xf32>
    %cst_49 = arith.constant 0.000000e+00 : f32
    %117 = vector.broadcast %cst_49 : f32 to vector<16x32xf32>
    %118 = arith.maximumf %116, %117 : vector<16x32xf32>
    %c0_50 = arith.constant 0 : index
    %c0_51 = arith.constant 0 : index
    %119 = vector.load %arg14[%c0_50, %c0_51] : memref<16x32xf32, #tpu.memory_space<vmem>>, vector<16x32xf32>
    tpu.vector_store %arg14[%c0_50, %c0_51], %118 {strides = array<i32>} : memref<16x32xf32, #tpu.memory_space<vmem>>, vector<16x32xf32>,
    return
  }
}

</mosaic_0001>

<llo_original>
// kernel: weighted_gcn_block_forward_from_adj.1
$region0: #{weighted_gcn_block_forward_from_adj.1}
  #allocation0 [shape = 'u32[]', space=smem, size = 0x4, offset = 0x4, fixed_abs, tag = 'smem constant byte address 0x4 - core index']
  #allocation1 [shape = 'u32[144,128]{1,0:T(1,128)}', space=vmem, size = 0x12000, scoped, tag = 'internal scratch']
  %s0 = inlined_call_operand.vmem [shape: f32[16,16], index: 0, kind: input, shape index: {}]
  %s1 = inlined_call_operand.vmem [shape: f32[16,16], index: 1, kind: input, shape index: {}]
  %s2 = inlined_call_operand.vmem [shape: f32[16,32], index: 2, kind: input, shape index: {}]
  %s3 = inlined_call_operand.vmem [shape: f32[1,32], index: 3, kind: input, shape index: {}]
  %s4 = inlined_call_operand.vmem [shape: f32[1,16], index: 4, kind: input, shape index: {}]
  %s5 = inlined_call_operand.vmem [shape: f32[1,16], index: 5, kind: input, shape index: {}]
  %s6 = inlined_call_operand.vmem [shape: f32[32,64], index: 6, kind: input, shape index: {}]
  %s7 = inlined_call_operand.vmem [shape: f32[1,64], index: 7, kind: input, shape index: {}]
  %s8 = inlined_call_operand.vmem [shape: f32[1,32], index: 8, kind: input, shape index: {}]
  %s9 = inlined_call_operand.vmem [shape: f32[1,32], index: 9, kind: input, shape index: {}]
  %s10 = inlined_call_operand.vmem [shape: f32[64,32], index: 10, kind: input, shape index: {}]
  %s11 = inlined_call_operand.vmem [shape: f32[1,32], index: 11, kind: input, shape index: {}]
  %s12 = inlined_call_operand.vmem [shape: f32[1,16], index: 12, kind: input, shape index: {}]
  %s13 = inlined_call_operand.vmem [shape: f32[1,16], index: 13, kind: input, shape index: {}]
  %s14 = inlined_call_operand.vmem [shape: f32[16,32], index: 14, kind: output, shape index: {}]
  %s15 = sld [smem:[#allocation0]]
  $region66: #{weighted_gcn_block_forward_from_adj.1} parent=0
    _
  %s17 = ssub.s32 1, %s15
  %s18 = scalar_select 0, %s17, %s15
  // Predicated region
  $region2: #{weighted_gcn_block_forward_from_adj.1} parent=0 // pred_check
    _
  $region3: #{weighted_gcn_block_forward_from_adj.1} parent=0 // pred_check_branch
    %20 = sbr.rel (0) target = $region5
  $region4: #{weighted_gcn_block_forward_from_adj.1} parent=0 // pred_region
    _
  $region5: #{weighted_gcn_block_forward_from_adj.1} parent=0 // pred_fallthru
    _
  // Predicated region
  $region6: #{weighted_gcn_block_forward_from_adj.1} parent=0 // pred_check
    _
  $region7: #{weighted_gcn_block_forward_from_adj.1} parent=0 // pred_check_branch
    %22 = sbr.rel (0) target = $region9
  $region8: #{weighted_gcn_block_forward_from_adj.1} parent=0 // pred_region
    _
  $region9: #{weighted_gcn_block_forward_from_adj.1} parent=0 // pred_fallthru
    _
  // Predicated region
  $region10: #{weighted_gcn_block_forward_from_adj.1} parent=0 // pred_check
    _
  $region11: #{weighted_gcn_block_forward_from_adj.1} parent=0 // pred_check_branch
    %24 = sbr.rel (0) target = $region13
  $region12: #{weighted_gcn_block_forward_from_adj.1} parent=0 // pred_region
    _
  $region13: #{weighted_gcn_block_forward_from_adj.1} parent=0 // pred_fallthru
    _
  // Predicated region
  $region14: #{weighted_gcn_block_forward_from_adj.1} parent=0 // pred_check
    _
  $region15: #{weighted_gcn_block_forward_from_adj.1} parent=0 // pred_check_branch
    %26 = sbr.rel (0) target = $region17
  $region16: #{weighted_gcn_block_forward_from_adj.1} parent=0 // pred_region
    _
  $region17: #{weighted_gcn_block_forward_from_adj.1} parent=0 // pred_fallthru
    _
  // Predicated region
  $region18: #{weighted_gcn_block_forward_from_adj.1} parent=0 // pred_check
    _
  $region19: #{weighted_gcn_block_forward_from_adj.1} parent=0 // pred_check_branch
    %28 = sbr.rel (0) target = $region21
  $region20: #{weighted_gcn_block_forward_from_adj.1} parent=0 // pred_region
    _
  $region21: #{weighted_gcn_block_forward_from_adj.1} parent=0 // pred_fallthru
    _
  // Predicated region
  $region22: #{weighted_gcn_block_forward_from_adj.1} parent=0 // pred_check
    _
  $region23: #{weighted_gcn_block_forward_from_adj.1} parent=0 // pred_check_branch
    %30 = sbr.rel (0) target = $region25
  $region24: #{weighted_gcn_block_forward_from_adj.1} parent=0 // pred_region
    _
  $region25: #{weighted_gcn_block_forward_from_adj.1} parent=0 // pred_fallthru
    _
  // Predicated region
  $region26: #{weighted_gcn_block_forward_from_adj.1} parent=0 // pred_check
    _
  $region27: #{weighted_gcn_block_forward_from_adj.1} parent=0 // pred_check_branch
    %32 = sbr.rel (0) target = $region29
  $region28: #{weighted_gcn_block_forward_from_adj.1} parent=0 // pred_region
    _
  $region29: #{weighted_gcn_block_forward_from_adj.1} parent=0 // pred_fallthru
    _
  // Predicated region
  $region30: #{weighted_gcn_block_forward_from_adj.1} parent=0 // pred_check
    _
  $region31: #{weighted_gcn_block_forward_from_adj.1} parent=0 // pred_check_branch
    %34 = sbr.rel (0) target = $region33
  $region32: #{weighted_gcn_block_forward_from_adj.1} parent=0 // pred_region
    _
  $region33: #{weighted_gcn_block_forward_from_adj.1} parent=0 // pred_fallthru
    _
  // Predicated region
  $region34: #{weighted_gcn_block_forward_from_adj.1} parent=0 // pred_check
    _
  $region35: #{weighted_gcn_block_forward_from_adj.1} parent=0 // pred_check_branch
    %36 = sbr.rel (0) target = $region37
  $region36: #{weighted_gcn_block_forward_from_adj.1} parent=0 // pred_region
    _
  $region37: #{weighted_gcn_block_forward_from_adj.1} parent=0 // pred_fallthru
    _
  // Predicated region
  $region38: #{weighted_gcn_block_forward_from_adj.1} parent=0 // pred_check
    _
  $region39: #{weighted_gcn_block_forward_from_adj.1} parent=0 // pred_check_branch
    %38 = sbr.rel (0) target = $region41
  $region40: #{weighted_gcn_block_forward_from_adj.1} parent=0 // pred_region
    _
  $region41: #{weighted_gcn_block_forward_from_adj.1} parent=0 // pred_fallthru
    _
  // Predicated region
  $region42: #{weighted_gcn_block_forward_from_adj.1} parent=0 // pred_check
    _
  $region43: #{weighted_gcn_block_forward_from_adj.1} parent=0 // pred_check_branch
    %40 = sbr.rel (0) target = $region45
  $region44: #{weighted_gcn_block_forward_from_adj.1} parent=0 // pred_region
    _
  $region45: #{weighted_gcn_block_forward_from_adj.1} parent=0 // pred_fallthru
    _
  // Predicated region
  $region46: #{weighted_gcn_block_forward_from_adj.1} parent=0 // pred_check
    _
  $region47: #{weighted_gcn_block_forward_from_adj.1} parent=0 // pred_check_branch
    %42 = sbr.rel (0) target = $region49
  $region48: #{weighted_gcn_block_forward_from_adj.1} parent=0 // pred_region
    _
  $region49: #{weighted_gcn_block_forward_from_adj.1} parent=0 // pred_fallthru
    _
  // Predicated region
  $region50: #{weighted_gcn_block_forward_from_adj.1} parent=0 // pred_check
    _
  $region51: #{weighted_gcn_block_forward_from_adj.1} parent=0 // pred_check_branch
    %44 = sbr.rel (0) target = $region53
  $region52: #{weighted_gcn_block_forward_from_adj.1} parent=0 // pred_region
    _
  $region53: #{weighted_gcn_block_forward_from_adj.1} parent=0 // pred_fallthru
    _
  // Predicated region
  $region54: #{weighted_gcn_block_forward_from_adj.1} parent=0 // pred_check
    _
  $region55: #{weighted_gcn_block_forward_from_adj.1} parent=0 // pred_check_branch
    %46 = sbr.rel (0) target = $region57
  $region56: #{weighted_gcn_block_forward_from_adj.1} parent=0 // pred_region
    _
  $region57: #{weighted_gcn_block_forward_from_adj.1} parent=0 // pred_fallthru
    _
  %v47 = vld [vmem:[%s0] sm:$0xff]
  %v48 = vld [vmem:[%s0 + $0x8] sm:$0xff]
  %v49 = vld [vmem:[%s1] sm:$0xff]
  %v50 = vld [vmem:[%s1 + $0x8] sm:$0xff]
  %v51 = vld [vmem:[%s2] sm:$0xff]
  %v52 = vld [vmem:[%s2 + $0x8] sm:$0xff]
  %v53 = vld [vmem:[%s3] sm:$0x1]
  %v54 = vld [vmem:[%s4] sm:$0x1]
  %v55 = vld [vmem:[%s5] sm:$0x1]
  %vm56 = vcmask 130048
  %v58 = vsel %vm56, %v49, 0
  %v61 = vsel %vm56, %v50, 0
  %63 = vmatprep.subr.mxu0 0.0
  %64 = vmatpush1.msra.mxu0 %v51
  %65 = vmatprep.subr.mxu0 0.0
  %66 = vmatpush1.msra.mxu0 %v52
  %67 = vmatprep.subr.mxu0 0.0
  %68 = vmatpush1.msra.mxu0 0.0
  %69 = vmatprep.subr.mxu0 0.0
  %70 = vmatpush1.msra.mxu0 0.0
  %71 = vmatprep.subr.mxu0 0.0
  %72 = vmatpush1.msra.mxu0 0.0
  %73 = vmatprep.subr.mxu0 0.0
  %74 = vmatpush1.msra.mxu0 0.0
  %75 = vmatprep.subr.mxu0 0.0
  %76 = vmatpush1.msra.mxu0 0.0
  %77 = vmatprep.subr.mxu0 0.0
  %78 = vmatpush1.msra.mxu0 0.0
  %79 = vmatprep.subr.mxu0 0.0
  %80 = vmatpush1.msra.mxu0 0.0
  %81 = vmatprep.subr.mxu0 0.0
  %82 = vmatpush1.msra.mxu0 0.0
  %83 = vmatprep.subr.mxu0 0.0
  %84 = vmatpush1.msra.mxu0 0.0
  %85 = vmatprep.subr.mxu0 0.0
  %86 = vmatpush1.msra.mxu0 0.0
  %87 = vmatprep.subr.mxu0 0.0
  %88 = vmatpush1.msra.mxu0 0.0
  %89 = vmatprep.subr.mxu0 0.0
  %90 = vmatpush1.msra.mxu0 0.0
  %91 = vmatprep.subr.mxu0 0.0
  %92 = vmatpush1.msra.mxu0 0.0
  %93 = vmatprep.subr.mxu0 0.0
  %94 = vmatpush1.msra.mxu0 0.0
  %95 = vmatprep.subr.mxu0 0.0
  %96 = vmatpush1.msra.mxu0 0.0
  %97 = vmatprep.subr.mxu0 0.0
  %98 = vmatpush1.msra.mxu0 0.0
  %99 = vmatprep.subr.mxu0 0.0
  %100 = vmatpush1.msra.mxu0 0.0
  %101 = vmatprep.subr.mxu0 0.0
  %102 = vmatpush1.msra.mxu0 0.0
  %103 = vmatprep.subr.mxu0 0.0
  %104 = vmatpush1.msra.mxu0 0.0
  %105 = vmatprep.subr.mxu0 0.0
  %106 = vmatpush1.msra.mxu0 0.0
  %107 = vmatprep.subr.mxu0 0.0
  %108 = vmatpush1.msra.mxu0 0.0
  %109 = vmatprep.subr.mxu0 0.0
  %110 = vmatpush1.msra.mxu0 0.0
  %111 = vmatprep.subr.mxu0 0.0
  %112 = vmatpush1.msra.mxu0 0.0
  %113 = vmatprep.subr.mxu0 0.0
  %114 = vmatpush1.msra.mxu0 0.0
  %115 = vmatprep.subr.mxu0 0.0
  %116 = vmatpush1.msra.mxu0 0.0
  %117 = vmatprep.subr.mxu0 0.0
  %118 = vmatpush1.msra.mxu0 0.0
  %119 = vmatprep.subr.mxu0 0.0
  %120 = vmatpush1.msra.mxu0 0.0
  %121 = vmatprep.subr.mxu0 0.0
  %122 = vmatpush1.msra.mxu0 0.0
  %123 = vmatprep.subr.mxu0 0.0
  %124 = vmatpush1.msra.mxu0 0.0
  %125 = vmatprep.subr.mxu0 0.0
  %126 = vmatpush1.msra.mxu0 0.0
  %127 = vmatprep.mubr.f32.mxu0 0.0
  %128 = vmatmul.mubr.f32.gmra.mrb[0].mxu0 %v58
  %v129 = vpop.f32.mrb[0].mxu0
  %v130 = vadd.f32 0.0, %v129
  %v131 = vpop.f32.mrb[0].mxu0
  %132 = vmatprep.mubr.f32.mxu0 0.0
  %133 = vmatmul.mubr.f32.gmra.mrb[0].mxu0 %v61
  %v134 = vpop.f32.mrb[0].mxu0
  %v135 = vadd.f32 0.0, %v134
  %v136 = vpop.f32.mrb[0].mxu0
  %137 = vdwg.mxu0
  %v139 = vlaneseq
  %v140 = vshrl.u32 %v139, 7
  %v141 = vsub.s32 0, %v140
  %v142 = vrot.slane %v53, %v141
  %v145 = vsel %vm56, %v47, 0
  %v148 = vsel %vm56, %v48, 0
  %150 = vmatprep.subr.mxu0 0.0
  %151 = vmatpush1.msra.mxu0 %v130
  %152 = vmatprep.subr.mxu0 0.0
  %153 = vmatpush1.msra.mxu0 %v135
  %154 = vmatprep.subr.mxu0 0.0
  %155 = vmatpush1.msra.mxu0 0.0
  %156 = vmatprep.subr.mxu0 0.0
  %157 = vmatpush1.msra.mxu0 0.0
  %158 = vmatprep.subr.mxu0 0.0
  %159 = vmatpush1.msra.mxu0 0.0
  %160 = vmatprep.subr.mxu0 0.0
  %161 = vmatpush1.msra.mxu0 0.0
  %162 = vmatprep.subr.mxu0 0.0
  %163 = vmatpush1.msra.mxu0 0.0
  %164 = vmatprep.subr.mxu0 0.0
  %165 = vmatpush1.msra.mxu0 0.0
  %166 = vmatprep.subr.mxu0 0.0
  %167 = vmatpush1.msra.mxu0 0.0
  %168 = vmatprep.subr.mxu0 0.0
  %169 = vmatpush1.msra.mxu0 0.0
  %170 = vmatprep.subr.mxu0 0.0
  %171 = vmatpush1.msra.mxu0 0.0
  %172 = vmatprep.subr.mxu0 0.0
  %173 = vmatpush1.msra.mxu0 0.0
  %174 = vmatprep.subr.mxu0 0.0
  %175 = vmatpush1.msra.mxu0 0.0
  %176 = vmatprep.subr.mxu0 0.0
  %177 = vmatpush1.msra.mxu0 0.0
  %178 = vmatprep.subr.mxu0 0.0
  %179 = vmatpush1.msra.mxu0 0.0
  %180 = vmatprep.subr.mxu0 0.0
  %181 = vmatpush1.msra.mxu0 0.0
  %182 = vmatprep.subr.mxu0 0.0
  %183 = vmatpush1.msra.mxu0 0.0
  %184 = vmatprep.subr.mxu0 0.0
  %185 = vmatpush1.msra.mxu0 0.0
  %186 = vmatprep.subr.mxu0 0.0
  %187 = vmatpush1.msra.mxu0 0.0
  %188 = vmatprep.subr.mxu0 0.0
  %189 = vmatpush1.msra.mxu0 0.0
  %190 = vmatprep.subr.mxu0 0.0
  %191 = vmatpush1.msra.mxu0 0.0
  %192 = vmatprep.subr.mxu0 0.0
  %193 = vmatpush1.msra.mxu0 0.0
  %194 = vmatprep.subr.mxu0 0.0
  %195 = vmatpush1.msra.mxu0 0.0
  %196 = vmatprep.subr.mxu0 0.0
  %197 = vmatpush1.msra.mxu0 0.0
  %198 = vmatprep.subr.mxu0 0.0
  %199 = vmatpush1.msra.mxu0 0.0
  %200 = vmatprep.subr.mxu0 0.0
  %201 = vmatpush1.msra.mxu0 0.0
  %202 = vmatprep.subr.mxu0 0.0
  %203 = vmatpush1.msra.mxu0 0.0
  %204 = vmatprep.subr.mxu0 0.0
  %205 = vmatpush1.msra.mxu0 0.0
  %206 = vmatprep.subr.mxu0 0.0
  %207 = vmatpush1.msra.mxu0 0.0
  %208 = vmatprep.subr.mxu0 0.0
  %209 = vmatpush1.msra.mxu0 0.0
  %210 = vmatprep.subr.mxu0 0.0
  %211 = vmatpush1.msra.mxu0 0.0
  %212 = vmatprep.subr.mxu0 0.0
  %213 = vmatpush1.msra.mxu0 0.0
  %214 = vmatprep.mubr.f32.mxu0 0.0
  %215 = vmatmul.mubr.f32.gmra.mrb[0].mxu0 %v145
  %v216 = vpop.f32.mrb[0].mxu0
  %v217 = vadd.f32 %v142, %v216
  %v218 = vpop.f32.mrb[0].mxu0
  %219 = vmatprep.mubr.f32.mxu0 0.0
  %220 = vmatmul.mubr.f32.gmra.mrb[0].mxu0 %v148
  %v221 = vpop.f32.mrb[0].mxu0
  %v222 = vadd.f32 %v142, %v221
  %v223 = vpop.f32.mrb[0].mxu0
  %224 = vdwg.mxu0
  %vm225 = vcmask 261120
  %v226 = vsel %vm225, %v217, 0.0
  %v227 = vsel %vm225, %v222, 0.0
  %v228 = vadd.f32 %v226, %v227
  %v229 = vrot.slane %v228, 4
  %v230 = vadd.f32 %v228, %v229
  %v231 = vrot.slane %v230, 2
  %v232 = vadd.f32 %v230, %v231
  %v233 = vrot.slane %v232, 1
  %v234 = vadd.f32 %v232, %v233
  %v235 = vmul.f32 %v217, %v217
  %v236 = vmul.f32 %v222, %v222
  %v237 = vsel %vm225, %v235, 0.0
  %v238 = vsel %vm225, %v236, 0.0
  %v239 = vadd.f32 %v237, %v238
  %v240 = vrot.slane %v239, 4
  %v241 = vadd.f32 %v239, %v240
  %v242 = vrot.slane %v241, 2
  %v243 = vadd.f32 %v241, %v242
  %v244 = vrot.slane %v243, 1
  %v245 = vadd.f32 %v243, %v244
  %247 = vrot.lane.b32.xlu0 %v234, 112
  %v248 = vpop.permute.xlu0 %247
  %v250 = vadd.f32 %v234, %v248
  %252 = vrot.lane.b32.xlu0 %v245, 112
  %v253 = vpop.permute.xlu0 %252
  %v255 = vadd.f32 %v245, %v253
  %v256 = vmul.f32 %v250, 0.03125
  %v257 = vmul.f32 %v255, 0.03125
  %v258 = vmul.f32 %v256, %v256
  %v259 = vsub.f32 %v257, %v258
  %v260 = vadd.f32 %v259, 1e-05
  %v261 = vrsqrt.pop %v260
  %v262 = vmul.f32 %v54, %v261
  %v263 = vmul.f32 %v256, %v262
  %v264 = vsub.f32 %v55, %v263
  %v266 = vlaneseq
  %v267 = vshrl.u32 %v266, 7
  %v268 = vsub.s32 0, %v267
  %v269 = vrot.slane %v262, %v268
  %270 = vrot.lane.b32.xlu0 %v269, 16
  %v271 = vpop.permute.xlu0 %270
  %v273 = vsel %vm56, %v262, %v271
  %v275 = vlaneseq
  %v276 = vshrl.u32 %v275, 7
  %v277 = vsub.s32 0, %v276
  %v278 = vrot.slane %v264, %v277
  %279 = vrot.lane.b32.xlu0 %v278, 16
  %v280 = vpop.permute.xlu0 %279
  %v282 = vsel %vm56, %v264, %v280
  %v283 = vlaneseq
  %v284 = vshrl.u32 %v283, 7
  %v285 = vsub.s32 0, %v284
  %v286 = vrot.slane %v273, %v285
  %v287 = vmul.f32 %v217, %v286
  %v288 = vmul.f32 %v222, %v286
  %v289 = vlaneseq
  %v290 = vshrl.u32 %v289, 7
  %v291 = vsub.s32 0, %v290
  %v292 = vrot.slane %v282, %v291
  %v293 = vadd.f32 %v287, %v292
  %v294 = vadd.f32 %v288, %v292
  %v295 = vmax.f32 %v293, 0.0
  %v296 = vmax.f32 %v294, 0.0
  %v297 = vld [vmem:[%s6] sm:$0xff]
  %v298 = vld [vmem:[%s6 + $0x8] sm:$0xff]
  %v299 = vld [vmem:[%s6 + $0x10] sm:$0xff]
  %v300 = vld [vmem:[%s6 + $0x18] sm:$0xff]
  %v301 = vld [vmem:[%s7] sm:$0x1]
  %v302 = vld [vmem:[%s8] sm:$0x1]
  %v303 = vld [vmem:[%s9] sm:$0x1]
  %v305 = vsel %vm225, %v295, 0
  %v308 = vsel %vm225, %v296, 0
  %310 = vmatprep.subr.mxu0 0.0
  %311 = vmatpush1.msra.mxu0 %v297
  %312 = vmatprep.subr.mxu0 0.0
  %313 = vmatpush1.msra.mxu0 %v298
  %314 = vmatprep.subr.mxu0 0.0
  %315 = vmatpush1.msra.mxu0 %v299
  %316 = vmatprep.subr.mxu0 0.0
  %317 = vmatpush1.msra.mxu0 %v300
  %318 = vmatprep.subr.mxu0 0.0
  %319 = vmatpush1.msra.mxu0 0.0
  %320 = vmatprep.subr.mxu0 0.0
  %321 = vmatpush1.msra.mxu0 0.0
  %322 = vmatprep.subr.mxu0 0.0
  %323 = vmatpush1.msra.mxu0 0.0
  %324 = vmatprep.subr.mxu0 0.0
  %325 = vmatpush1.msra.mxu0 0.0
  %326 = vmatprep.subr.mxu0 0.0
  %327 = vmatpush1.msra.mxu0 0.0
  %328 = vmatprep.subr.mxu0 0.0
  %329 = vmatpush1.msra.mxu0 0.0
  %330 = vmatprep.subr.mxu0 0.0
  %331 = vmatpush1.msra.mxu0 0.0
  %332 = vmatprep.subr.mxu0 0.0
  %333 = vmatpush1.msra.mxu0 0.0
  %334 = vmatprep.subr.mxu0 0.0
  %335 = vmatpush1.msra.mxu0 0.0
  %336 = vmatprep.subr.mxu0 0.0
  %337 = vmatpush1.msra.mxu0 0.0
  %338 = vmatprep.subr.mxu0 0.0
  %339 = vmatpush1.msra.mxu0 0.0
  %340 = vmatprep.subr.mxu0 0.0
  %341 = vmatpush1.msra.mxu0 0.0
  %342 = vmatprep.subr.mxu0 0.0
  %343 = vmatpush1.msra.mxu0 0.0
  %344 = vmatprep.subr.mxu0 0.0
  %345 = vmatpush1.msra.mxu0 0.0
  %346 = vmatprep.subr.mxu0 0.0
  %347 = vmatpush1.msra.mxu0 0.0
  %348 = vmatprep.subr.mxu0 0.0
  %349 = vmatpush1.msra.mxu0 0.0
  %350 = vmatprep.subr.mxu0 0.0
  %351 = vmatpush1.msra.mxu0 0.0
  %352 = vmatprep.subr.mxu0 0.0
  %353 = vmatpush1.msra.mxu0 0.0
  %354 = vmatprep.subr.mxu0 0.0
  %355 = vmatpush1.msra.mxu0 0.0
  %356 = vmatprep.subr.mxu0 0.0
  %357 = vmatpush1.msra.mxu0 0.0
  %358 = vmatprep.subr.mxu0 0.0
  %359 = vmatpush1.msra.mxu0 0.0
  %360 = vmatprep.subr.mxu0 0.0
  %361 = vmatpush1.msra.mxu0 0.0
  %362 = vmatprep.subr.mxu0 0.0
  %363 = vmatpush1.msra.mxu0 0.0
  %364 = vmatprep.subr.mxu0 0.0
  %365 = vmatpush1.msra.mxu0 0.0
  %366 = vmatprep.subr.mxu0 0.0
  %367 = vmatpush1.msra.mxu0 0.0
  %368 = vmatprep.subr.mxu0 0.0
  %369 = vmatpush1.msra.mxu0 0.0
  %370 = vmatprep.subr.mxu0 0.0
  %371 = vmatpush1.msra.mxu0 0.0
  %372 = vmatprep.subr.mxu0 0.0
  %373 = vmatpush1.msra.mxu0 0.0
  %374 = vmatprep.mubr.f32.mxu0 0.0
  %375 = vmatmul.mubr.f32.gmra.mrb[0].mxu0 %v305
  %v376 = vpop.f32.mrb[0].mxu0
  %v377 = vadd.f32 0.0, %v376
  %v378 = vpop.f32.mrb[0].mxu0
  %379 = vmatprep.mubr.f32.mxu0 0.0
  %380 = vmatmul.mubr.f32.gmra.mrb[0].mxu0 %v308
  %v381 = vpop.f32.mrb[0].mxu0
  %v382 = vadd.f32 0.0, %v381
  %v383 = vpop.f32.mrb[0].mxu0
  %384 = vdwg.mxu0
  %v386 = vlaneseq
  %v387 = vshrl.u32 %v386, 7
  %v388 = vsub.s32 0, %v387
  %v389 = vrot.slane %v301, %v388
  %391 = vmatprep.subr.mxu0 0.0
  %392 = vmatpush1.msra.mxu0 %v377
  %393 = vmatprep.subr.mxu0 0.0
  %394 = vmatpush1.msra.mxu0 %v382
  %395 = vmatprep.subr.mxu0 0.0
  %396 = vmatpush1.msra.mxu0 0.0
  %397 = vmatprep.subr.mxu0 0.0
  %398 = vmatpush1.msra.mxu0 0.0
  %399 = vmatprep.subr.mxu0 0.0
  %400 = vmatpush1.msra.mxu0 0.0
  %401 = vmatprep.subr.mxu0 0.0
  %402 = vmatpush1.msra.mxu0 0.0
  %403 = vmatprep.subr.mxu0 0.0
  %404 = vmatpush1.msra.mxu0 0.0
  %405 = vmatprep.subr.mxu0 0.0
  %406 = vmatpush1.msra.mxu0 0.0
  %407 = vmatprep.subr.mxu0 0.0
  %408 = vmatpush1.msra.mxu0 0.0
  %409 = vmatprep.subr.mxu0 0.0
  %410 = vmatpush1.msra.mxu0 0.0
  %411 = vmatprep.subr.mxu0 0.0
  %412 = vmatpush1.msra.mxu0 0.0
  %413 = vmatprep.subr.mxu0 0.0
  %414 = vmatpush1.msra.mxu0 0.0
  %415 = vmatprep.subr.mxu0 0.0
  %416 = vmatpush1.msra.mxu0 0.0
  %417 = vmatprep.subr.mxu0 0.0
  %418 = vmatpush1.msra.mxu0 0.0
  %419 = vmatprep.subr.mxu0 0.0
  %420 = vmatpush1.msra.mxu0 0.0
  %421 = vmatprep.subr.mxu0 0.0
  %422 = vmatpush1.msra.mxu0 0.0
  %423 = vmatprep.subr.mxu0 0.0
  %424 = vmatpush1.msra.mxu0 0.0
  %425 = vmatprep.subr.mxu0 0.0
  %426 = vmatpush1.msra.mxu0 0.0
  %427 = vmatprep.subr.mxu0 0.0
  %428 = vmatpush1.msra.mxu0 0.0
  %429 = vmatprep.subr.mxu0 0.0
  %430 = vmatpush1.msra.mxu0 0.0
  %431 = vmatprep.subr.mxu0 0.0
  %432 = vmatpush1.msra.mxu0 0.0
  %433 = vmatprep.subr.mxu0 0.0
  %434 = vmatpush1.msra.mxu0 0.0
  %435 = vmatprep.subr.mxu0 0.0
  %436 = vmatpush1.msra.mxu0 0.0
  %437 = vmatprep.subr.mxu0 0.0
  %438 = vmatpush1.msra.mxu0 0.0
  %439 = vmatprep.subr.mxu0 0.0
  %440 = vmatpush1.msra.mxu0 0.0
  %441 = vmatprep.subr.mxu0 0.0
  %442 = vmatpush1.msra.mxu0 0.0
  %443 = vmatprep.subr.mxu0 0.0
  %444 = vmatpush1.msra.mxu0 0.0
  %445 = vmatprep.subr.mxu0 0.0
  %446 = vmatpush1.msra.mxu0 0.0
  %447 = vmatprep.subr.mxu0 0.0
  %448 = vmatpush1.msra.mxu0 0.0
  %449 = vmatprep.subr.mxu0 0.0
  %450 = vmatpush1.msra.mxu0 0.0
  %451 = vmatprep.subr.mxu0 0.0
  %452 = vmatpush1.msra.mxu0 0.0
  %453 = vmatprep.subr.mxu0 0.0
  %454 = vmatpush1.msra.mxu0 0.0
  %455 = vmatprep.mubr.f32.mxu0 0.0
  %456 = vmatmul.mubr.f32.gmra.mrb[0].mxu0 %v145
  %v457 = vpop.f32.mrb[0].mxu0
  %v458 = vadd.f32 %v389, %v457
  %v459 = vpop.f32.mrb[0].mxu0
  %460 = vmatprep.mubr.f32.mxu0 0.0
  %461 = vmatmul.mubr.f32.gmra.mrb[0].mxu0 %v148
  %v462 = vpop.f32.mrb[0].mxu0
  %v463 = vadd.f32 %v389, %v462
  %v464 = vpop.f32.mrb[0].mxu0
  %465 = vdwg.mxu0
  %vm466 = vcmask 523264
  %v467 = vsel %vm466, %v458, 0.0
  %v468 = vsel %vm466, %v463, 0.0
  %v469 = vadd.f32 %v467, %v468
  %v470 = vrot.slane %v469, 4
  %v471 = vadd.f32 %v469, %v470
  %v472 = vrot.slane %v471, 2
  %v473 = vadd.f32 %v471, %v472
  %v474 = vrot.slane %v473, 1
  %v475 = vadd.f32 %v473, %v474
  %v476 = vmul.f32 %v458, %v458
  %v477 = vmul.f32 %v463, %v463
  %v478 = vsel %vm466, %v476, 0.0
  %v479 = vsel %vm466, %v477, 0.0
  %v480 = vadd.f32 %v478, %v479
  %v481 = vrot.slane %v480, 4
  %v482 = vadd.f32 %v480, %v481
  %v483 = vrot.slane %v482, 2
  %v484 = vadd.f32 %v482, %v483
  %v485 = vrot.slane %v484, 1
  %v486 = vadd.f32 %v484, %v485
  %488 = vrot.lane.b32.xlu0 %v475, 96
  %v489 = vpop.permute.xlu0 %488
  %v491 = vadd.f32 %v475, %v489
  %493 = vrot.lane.b32.xlu0 %v486, 96
  %v494 = vpop.permute.xlu0 %493
  %v496 = vadd.f32 %v486, %v494
  %v497 = vmul.f32 %v491, 0.03125
  %v498 = vmul.f32 %v496, 0.03125
  %v499 = vmul.f32 %v497, %v497
  %v500 = vsub.f32 %v498, %v499
  %v501 = vadd.f32 %v500, 1e-05
  %v502 = vrsqrt.pop %v501
  %v503 = vmul.f32 %v302, %v502
  %v504 = vmul.f32 %v497, %v503
  %v505 = vsub.f32 %v303, %v504
  %v507 = vlaneseq
  %v508 = vshrl.u32 %v507, 7
  %v509 = vsub.s32 0, %v508
  %v510 = vrot.slane %v503, %v509
  %511 = vrot.lane.b32.xlu0 %v510, 32
  %v512 = vpop.permute.xlu0 %511
  %v514 = vsel %vm225, %v503, %v512
  %v516 = vlaneseq
  %v517 = vshrl.u32 %v516, 7
  %v518 = vsub.s32 0, %v517
  %v519 = vrot.slane %v505, %v518
  %520 = vrot.lane.b32.xlu0 %v519, 32
  %v521 = vpop.permute.xlu0 %520
  %v523 = vsel %vm225, %v505, %v521
  %v524 = vlaneseq
  %v525 = vshrl.u32 %v524, 7
  %v526 = vsub.s32 0, %v525
  %v527 = vrot.slane %v514, %v526
  %v528 = vmul.f32 %v458, %v527
  %v529 = vmul.f32 %v463, %v527
  %v530 = vlaneseq
  %v531 = vshrl.u32 %v530, 7
  %v532 = vsub.s32 0, %v531
  %v533 = vrot.slane %v523, %v532
  %v534 = vadd.f32 %v528, %v533
  %v535 = vadd.f32 %v529, %v533
  %v536 = vmax.f32 %v534, 0.0
  %v537 = vmax.f32 %v535, 0.0
  %v538 = vld [vmem:[%s10] sm:$0xff]
  %v539 = vld [vmem:[%s10 + $0x8] sm:$0xff]
  %v540 = vld [vmem:[%s10 + $0x10] sm:$0xff]
  %v541 = vld [vmem:[%s10 + $0x18] sm:$0xff]
  %v542 = vld [vmem:[%s10 + $0x20] sm:$0xff]
  %v543 = vld [vmem:[%s10 + $0x28] sm:$0xff]
  %v544 = vld [vmem:[%s10 + $0x30] sm:$0xff]
  %v545 = vld [vmem:[%s10 + $0x38] sm:$0xff]
  %v546 = vld [vmem:[%s11] sm:$0x1]
  %v547 = vld [vmem:[%s12] sm:$0x1]
  %v548 = vld [vmem:[%s13] sm:$0x1]
  %v550 = vsel %vm466, %v536, 0
  %v553 = vsel %vm466, %v537, 0
  %555 = vmatprep.subr.mxu0 0.0
  %556 = vmatpush1.msra.mxu0 %v538
  %557 = vmatprep.subr.mxu0 0.0
  %558 = vmatpush1.msra.mxu0 %v539
  %559 = vmatprep.subr.mxu0 0.0
  %560 = vmatpush1.msra.mxu0 %v540
  %561 = vmatprep.subr.mxu0 0.0
  %562 = vmatpush1.msra.mxu0 %v541
  %563 = vmatprep.subr.mxu0 0.0
  %564 = vmatpush1.msra.mxu0 %v542
  %565 = vmatprep.subr.mxu0 0.0
  %566 = vmatpush1.msra.mxu0 %v543
  %567 = vmatprep.subr.mxu0 0.0
  %568 = vmatpush1.msra.mxu0 %v544
  %569 = vmatprep.subr.mxu0 0.0
  %570 = vmatpush1.msra.mxu0 %v545
  %571 = vmatprep.subr.mxu0 0.0
  %572 = vmatpush1.msra.mxu0 0.0
  %573 = vmatprep.subr.mxu0 0.0
  %574 = vmatpush1.msra.mxu0 0.0
  %575 = vmatprep.subr.mxu0 0.0
  %576 = vmatpush1.msra.mxu0 0.0
  %577 = vmatprep.subr.mxu0 0.0
  %578 = vmatpush1.msra.mxu0 0.0
  %579 = vmatprep.subr.mxu0 0.0
  %580 = vmatpush1.msra.mxu0 0.0
  %581 = vmatprep.subr.mxu0 0.0
  %582 = vmatpush1.msra.mxu0 0.0
  %583 = vmatprep.subr.mxu0 0.0
  %584 = vmatpush1.msra.mxu0 0.0
  %585 = vmatprep.subr.mxu0 0.0
  %586 = vmatpush1.msra.mxu0 0.0
  %587 = vmatprep.subr.mxu0 0.0
  %588 = vmatpush1.msra.mxu0 0.0
  %589 = vmatprep.subr.mxu0 0.0
  %590 = vmatpush1.msra.mxu0 0.0
  %591 = vmatprep.subr.mxu0 0.0
  %592 = vmatpush1.msra.mxu0 0.0
  %593 = vmatprep.subr.mxu0 0.0
  %594 = vmatpush1.msra.mxu0 0.0
  %595 = vmatprep.subr.mxu0 0.0
  %596 = vmatpush1.msra.mxu0 0.0
  %597 = vmatprep.subr.mxu0 0.0
  %598 = vmatpush1.msra.mxu0 0.0
  %599 = vmatprep.subr.mxu0 0.0
  %600 = vmatpush1.msra.mxu0 0.0
  %601 = vmatprep.subr.mxu0 0.0
  %602 = vmatpush1.msra.mxu0 0.0
  %603 = vmatprep.subr.mxu0 0.0
  %604 = vmatpush1.msra.mxu0 0.0
  %605 = vmatprep.subr.mxu0 0.0
  %606 = vmatpush1.msra.mxu0 0.0
  %607 = vmatprep.subr.mxu0 0.0
  %608 = vmatpush1.msra.mxu0 0.0
  %609 = vmatprep.subr.mxu0 0.0
  %610 = vmatpush1.msra.mxu0 0.0
  %611 = vmatprep.subr.mxu0 0.0
  %612 = vmatpush1.msra.mxu0 0.0
  %613 = vmatprep.subr.mxu0 0.0
  %614 = vmatpush1.msra.mxu0 0.0
  %615 = vmatprep.subr.mxu0 0.0
  %616 = vmatpush1.msra.mxu0 0.0
  %617 = vmatprep.subr.mxu0 0.0
  %618 = vmatpush1.msra.mxu0 0.0
  %619 = vmatprep.mubr.f32.mxu0 0.0
  %620 = vmatmul.mubr.f32.gmra.mrb[0].mxu0 %v550
  %v621 = vpop.f32.mrb[0].mxu0
  %v622 = vadd.f32 0.0, %v621
  %v623 = vpop.f32.mrb[0].mxu0
  %624 = vmatprep.mubr.f32.mxu0 0.0
  %625 = vmatmul.mubr.f32.gmra.mrb[0].mxu0 %v553
  %v626 = vpop.f32.mrb[0].mxu0
  %v627 = vadd.f32 0.0, %v626
  %v628 = vpop.f32.mrb[0].mxu0
  %629 = vdwg.mxu0
  %v631 = vlaneseq
  %v632 = vshrl.u32 %v631, 7
  %v633 = vsub.s32 0, %v632
  %v634 = vrot.slane %v546, %v633
  %636 = vmatprep.subr.mxu0 0.0
  %637 = vmatpush1.msra.mxu0 %v622
  %638 = vmatprep.subr.mxu0 0.0
  %639 = vmatpush1.msra.mxu0 %v627
  %640 = vmatprep.subr.mxu0 0.0
  %641 = vmatpush1.msra.mxu0 0.0
  %642 = vmatprep.subr.mxu0 0.0
  %643 = vmatpush1.msra.mxu0 0.0
  %644 = vmatprep.subr.mxu0 0.0
  %645 = vmatpush1.msra.mxu0 0.0
  %646 = vmatprep.subr.mxu0 0.0
  %647 = vmatpush1.msra.mxu0 0.0
  %648 = vmatprep.subr.mxu0 0.0
  %649 = vmatpush1.msra.mxu0 0.0
  %650 = vmatprep.subr.mxu0 0.0
  %651 = vmatpush1.msra.mxu0 0.0
  %652 = vmatprep.subr.mxu0 0.0
  %653 = vmatpush1.msra.mxu0 0.0
  %654 = vmatprep.subr.mxu0 0.0
  %655 = vmatpush1.msra.mxu0 0.0
  %656 = vmatprep.subr.mxu0 0.0
  %657 = vmatpush1.msra.mxu0 0.0
  %658 = vmatprep.subr.mxu0 0.0
  %659 = vmatpush1.msra.mxu0 0.0
  %660 = vmatprep.subr.mxu0 0.0
  %661 = vmatpush1.msra.mxu0 0.0
  %662 = vmatprep.subr.mxu0 0.0
  %663 = vmatpush1.msra.mxu0 0.0
  %664 = vmatprep.subr.mxu0 0.0
  %665 = vmatpush1.msra.mxu0 0.0
  %666 = vmatprep.subr.mxu0 0.0
  %667 = vmatpush1.msra.mxu0 0.0
  %668 = vmatprep.subr.mxu0 0.0
  %669 = vmatpush1.msra.mxu0 0.0
  %670 = vmatprep.subr.mxu0 0.0
  %671 = vmatpush1.msra.mxu0 0.0
  %672 = vmatprep.subr.mxu0 0.0
  %673 = vmatpush1.msra.mxu0 0.0
  %674 = vmatprep.subr.mxu0 0.0
  %675 = vmatpush1.msra.mxu0 0.0
  %676 = vmatprep.subr.mxu0 0.0
  %677 = vmatpush1.msra.mxu0 0.0
  %678 = vmatprep.subr.mxu0 0.0
  %679 = vmatpush1.msra.mxu0 0.0
  %680 = vmatprep.subr.mxu0 0.0
  %681 = vmatpush1.msra.mxu0 0.0
  %682 = vmatprep.subr.mxu0 0.0
  %683 = vmatpush1.msra.mxu0 0.0
  %684 = vmatprep.subr.mxu0 0.0
  %685 = vmatpush1.msra.mxu0 0.0
  %686 = vmatprep.subr.mxu0 0.0
  %687 = vmatpush1.msra.mxu0 0.0
  %688 = vmatprep.subr.mxu0 0.0
  %689 = vmatpush1.msra.mxu0 0.0
  %690 = vmatprep.subr.mxu0 0.0
  %691 = vmatpush1.msra.mxu0 0.0
  %692 = vmatprep.subr.mxu0 0.0
  %693 = vmatpush1.msra.mxu0 0.0
  %694 = vmatprep.subr.mxu0 0.0
  %695 = vmatpush1.msra.mxu0 0.0
  %696 = vmatprep.subr.mxu0 0.0
  %697 = vmatpush1.msra.mxu0 0.0
  %698 = vmatprep.subr.mxu0 0.0
  %699 = vmatpush1.msra.mxu0 0.0
  %700 = vmatprep.mubr.f32.mxu0 0.0
  %701 = vmatmul.mubr.f32.gmra.mrb[0].mxu0 %v145
  %v702 = vpop.f32.mrb[0].mxu0
  %v703 = vadd.f32 %v634, %v702
  %v704 = vpop.f32.mrb[0].mxu0
  %705 = vmatprep.mubr.f32.mxu0 0.0
  %706 = vmatmul.mubr.f32.gmra.mrb[0].mxu0 %v148
  %v707 = vpop.f32.mrb[0].mxu0
  %v708 = vadd.f32 %v634, %v707
  %v709 = vpop.f32.mrb[0].mxu0
  %710 = vdwg.mxu0
  %v711 = vsel %vm225, %v703, 0.0
  %v712 = vsel %vm225, %v708, 0.0
  %v713 = vadd.f32 %v711, %v712
  %v714 = vrot.slane %v713, 4
  %v715 = vadd.f32 %v713, %v714
  %v716 = vrot.slane %v715, 2
  %v717 = vadd.f32 %v715, %v716
  %v718 = vrot.slane %v717, 1
  %v719 = vadd.f32 %v717, %v718
  %v720 = vmul.f32 %v703, %v703
  %v721 = vmul.f32 %v708, %v708
  %v722 = vsel %vm225, %v720, 0.0
  %v723 = vsel %vm225, %v721, 0.0
  %v724 = vadd.f32 %v722, %v723
  %v725 = vrot.slane %v724, 4
  %v726 = vadd.f32 %v724, %v725
  %v727 = vrot.slane %v726, 2
  %v728 = vadd.f32 %v726, %v727
  %v729 = vrot.slane %v728, 1
  %v730 = vadd.f32 %v728, %v729
  %732 = vrot.lane.b32.xlu0 %v719, 112
  %v733 = vpop.permute.xlu0 %732
  %v735 = vadd.f32 %v719, %v733
  %737 = vrot.lane.b32.xlu0 %v730, 112
  %v738 = vpop.permute.xlu0 %737
  %v740 = vadd.f32 %v730, %v738
  %v741 = vmul.f32 %v735, 0.03125
  %v742 = vmul.f32 %v740, 0.03125
  %v743 = vmul.f32 %v741, %v741
  %v744 = vsub.f32 %v742, %v743
  %v745 = vadd.f32 %v744, 1e-05
  %v746 = vrsqrt.pop %v745
  %v747 = vmul.f32 %v547, %v746
  %v748 = vmul.f32 %v741, %v747
  %v749 = vsub.f32 %v548, %v748
  %v751 = vlaneseq
  %v752 = vshrl.u32 %v751, 7
  %v753 = vsub.s32 0, %v752
  %v754 = vrot.slane %v747, %v753
  %755 = vrot.lane.b32.xlu0 %v754, 16
  %v756 = vpop.permute.xlu0 %755
  %v758 = vsel %vm56, %v747, %v756
  %v760 = vlaneseq
  %v761 = vshrl.u32 %v760, 7
  %v762 = vsub.s32 0, %v761
  %v763 = vrot.slane %v749, %v762
  %764 = vrot.lane.b32.xlu0 %v763, 16
  %v765 = vpop.permute.xlu0 %764
  %v767 = vsel %vm56, %v749, %v765
  %v768 = vlaneseq
  %v769 = vshrl.u32 %v768, 7
  %v770 = vsub.s32 0, %v769
  %v771 = vrot.slane %v758, %v770
  %v772 = vmul.f32 %v703, %v771
  %v773 = vmul.f32 %v708, %v771
  %v774 = vlaneseq
  %v775 = vshrl.u32 %v774, 7
  %v776 = vsub.s32 0, %v775
  %v777 = vrot.slane %v767, %v776
  %v778 = vadd.f32 %v772, %v777
  %v779 = vadd.f32 %v773, %v777
  %v780 = vmax.f32 %v778, 0.0
  %v781 = vmax.f32 %v779, 0.0
  %782 = vst.msk [vmem:[%s14] sm:$0xff] %vm225, %v780
  %783 = vst.msk [vmem:[%s14 + $0x8] sm:$0xff] %vm225, %v781
  // Predicated region
  $region58: #{weighted_gcn_block_forward_from_adj.1} parent=0 // pred_check
    _
  $region59: #{weighted_gcn_block_forward_from_adj.1} parent=0 // pred_check_branch
    %785 = sbr.rel (0) target = $region61
  $region60: #{weighted_gcn_block_forward_from_adj.1} parent=0 // pred_region
    _
  $region61: #{weighted_gcn_block_forward_from_adj.1} parent=0 // pred_fallthru
    _
  // Predicated region
  $region62: #{weighted_gcn_block_forward_from_adj.1} parent=0 // pred_check
    _
  $region63: #{weighted_gcn_block_forward_from_adj.1} parent=0 // pred_check_branch
    %787 = sbr.rel (0) target = $region65
  $region64: #{weighted_gcn_block_forward_from_adj.1} parent=0 // pred_region
    _
  $region65: #{weighted_gcn_block_forward_from_adj.1} parent=0 // pred_fallthru
    _

</llo_original>
